<compile_context>
chip_gen: v7x
topology: tpu7x:2x2x1
jax: 0.10.0
libtpu: 0.0.40
codegen_flags: <defaults>
</compile_context>

<pallas_src>
import jax
import jax.numpy as jnp
from jax import lax
from jax.experimental import pallas as pl
from jax.experimental.pallas import tpu as pltpu

LN_EPS = 1e-5  # torch.nn.LayerNorm default


def block_kernel(x_ref, gamma_ref, beta_ref, w_ref, b_ref, o_ref):
    """Fused LayerNorm -> Linear -> ReLU for one (TB, H) batch tile.

    x_ref:     (TB, H)  activations for this batch tile
    gamma_ref: (1, H)   LayerNorm weight      (VMEM-resident)
    beta_ref:  (1, H)   LayerNorm bias        (VMEM-resident)
    w_ref:     (H, H)   Linear weight, PyTorch (out,in) layout (VMEM-resident)
    b_ref:     (1, H)   Linear bias           (VMEM-resident)
    o_ref:     (TB, H)  output tile
    """
    # Hoisted parameter loads (reused for the whole tile).
    gamma = gamma_ref[...].astype(jnp.float32)
    beta = beta_ref[...].astype(jnp.float32)
    bias = b_ref[...].astype(jnp.float32)

    # LayerNorm statistics in f32 regardless of input dtype.
    x = x_ref[...].astype(jnp.float32)
    mean = jnp.mean(x, axis=-1, keepdims=True)
    centered = x - mean
    var = jnp.mean(centered * centered, axis=-1, keepdims=True)
    y = centered * lax.rsqrt(var + LN_EPS) * gamma + beta

    # Linear: contract y's axis 1 with w's axis 1 (i.e. y @ W.T) without
    # materializing a transpose. Weight stays in its native dtype (bf16 path
    # on the MXU when params are bf16); accumulate in f32.
    w = w_ref[...]
    h = lax.dot_general(
        y.astype(w.dtype), w,
        dimension_numbers=(((1,), (1,)), ((), ())),
        preferred_element_type=jnp.float32,
    )
    h = jnp.maximum(h + bias, 0.0)

    # TODO(synk): training-mode dropout (pltpu.prng_seed + prng_random_bits
    # mask, 1/(1-p) rescale) omitted; inference (identity) semantics here.
    o_ref[...] = h.astype(o_ref.dtype)


def block_forward(x, ln_gamma, ln_beta, lin_w, lin_b, *, batch_tile=512):
    """Block forward (eval mode).  x: (B, H); lin_w: (H_out, H_in) PyTorch layout."""
    B, H = x.shape

    # Batch tile: biggest convenient tile (multiple of 8, or full B for tiny
    # inputs) so x/out DMAs pipeline behind the matmul; weight stays resident.
    tb = B if B <= batch_tile else batch_tile
    grid = (pl.cdiv(B, tb),)

    gamma2 = ln_gamma.reshape(1, H)
    beta2 = ln_beta.reshape(1, H)
    bias2 = lin_b.reshape(1, H)

    act_bytes = jnp.dtype(x.dtype).itemsize
    w_bytes = H * H * jnp.dtype(lin_w.dtype).itemsize
    cost = pl.CostEstimate(
        flops=2 * B * H * H,
        transcendentals=0,
        bytes_accessed=2 * B * H * act_bytes + w_bytes + 3 * H * act_bytes,
    )

    # Double-buffered x/out tiles + (possibly double-buffered) weight + params.
    vmem_est = 4 * tb * H * act_bytes + 2 * w_bytes + 8 * H * act_bytes
    cp_kwargs = dict(
        # Batch axis is embarrassingly parallel -> shards across v7x's 2 TCs;
        # harmless on single-TC v5e/v6e.
        dimension_semantics=("parallel",),
    )
    if vmem_est > 32 * 1024 * 1024:
        cp_kwargs["vmem_limit_bytes"] = vmem_est

    # NOTE: for tiny H (< 128) the output store is a masked partial-vreg write;
    # production hidden_dims that are multiples of 128 are lane-dense already.
    return pl.pallas_call(
        block_kernel,
        out_shape=jax.ShapeDtypeStruct((B, H), x.dtype),
        grid_spec=pltpu.PrefetchScalarGridSpec(
            num_scalar_prefetch=0,
            grid=grid,
            in_specs=[
                pl.BlockSpec((tb, H), lambda i: (i, 0)),  # x: streamed per tile
                pl.BlockSpec((1, H), lambda i: (0, 0)),   # gamma: resident
                pl.BlockSpec((1, H), lambda i: (0, 0)),   # beta:  resident
                pl.BlockSpec((H, H), lambda i: (0, 0)),   # W:     resident
                pl.BlockSpec((1, H), lambda i: (0, 0)),   # bias:  resident
            ],
            out_specs=pl.BlockSpec((tb, H), lambda i: (i, 0)),
        ),
        compiler_params=pltpu.CompilerParams(**cp_kwargs),
        cost_estimate=cost,
    )(x, gamma2, beta2, lin_w, bias2)


def reference_forward(x, ln_gamma, ln_beta, lin_w, lin_b):
    """Pure-JAX reference mirroring torch semantics (eval mode)."""
    mean = jnp.mean(x, axis=-1, keepdims=True)
    var = jnp.mean((x - mean) ** 2, axis=-1, keepdims=True)
    xn = (x - mean) / jnp.sqrt(var + LN_EPS)
    y = xn * ln_gamma + ln_beta
    h = y @ lin_w.T + lin_b
    return jnp.maximum(h, 0.0)


if __name__ == "__main__":
    batch, hidden = 8, 32  # hidden_dim=32

    key = jax.random.PRNGKey(0)
    kx, kw, kb = jax.random.split(key, 3)

    x = jax.random.normal(kx, (batch, hidden), dtype=jnp.float32)

    # Deterministic parameter init (shapes per nn.Linear / nn.LayerNorm).
    bound = 1.0 / jnp.sqrt(hidden)
    lin_w = jax.random.uniform(kw, (hidden, hidden), jnp.float32, -bound, bound)
    lin_b = jax.random.uniform(kb, (hidden,), jnp.float32, -bound, bound)
    ln_gamma = jnp.ones((hidden,), jnp.float32)   # LayerNorm default init
    ln_beta = jnp.zeros((hidden,), jnp.float32)

    out = block_forward(x, ln_gamma, ln_beta, lin_w, lin_b)
    out = jax.block_until_ready(out)

    ref = reference_forward(x, ln_gamma, ln_beta, lin_w, lin_b)
    assert out.shape == (batch, hidden)
    assert jnp.allclose(out, ref, atol=1e-5, rtol=1e-5), "mismatch vs reference"

    print("KERNEL_OK")
</pallas_src>

<mosaic_0001>
module attributes {stable_mosaic.version = 11 : i64} {
  func.func @block_kernel(%arg0: i32, %arg1: memref<8x32xf32, #tpu.memory_space<vmem>>, %arg2: memref<1x32xf32, #tpu.memory_space<vmem>>, %arg3: memref<1x32xf32, #tpu.memory_space<vmem>>, %arg4: memref<32x32xf32, #tpu.memory_space<vmem>>, %arg5: memref<1x32xf32, #tpu.memory_space<vmem>>, %arg6: memref<8x32xf32, #tpu.memory_space<vmem>>) attributes {dimension_semantics = [#tpu.dimension_semantics<parallel>], iteration_bounds = array<i64: 1>, scalar_prefetch = 0 : i64, scratch_operands = 0 : i64, tpu.core_type = #tpu.core_type<tc>, window_params = [{transform_indices = @transform_0, window_bounds = array<i64: 8, 32>}, {pipeline_mode = #tpu.pipeline_mode<synchronous>, transform_indices = @transform_1, window_bounds = array<i64: 1, 32>}, {pipeline_mode = #tpu.pipeline_mode<synchronous>, transform_indices = @transform_2, window_bounds = array<i64: 1, 32>}, {pipeline_mode = #tpu.pipeline_mode<synchronous>, transform_indices = @transform_3, window_bounds = array<i64: 32, 32>}, {pipeline_mode = #tpu.pipeline_mode<synchronous>, transform_indices = @transform_4, window_bounds = array<i64: 1, 32>}, {transform_indices = @transform_5, window_bounds = array<i64: 8, 32>}]} {
    %c0 = arith.constant 0 : index
    %c0_0 = arith.constant 0 : index
    %0 = vector.load %arg2[%c0, %c0_0] : memref<1x32xf32, #tpu.memory_space<vmem>>, vector<1x32xf32>
    %c0_1 = arith.constant 0 : index
    %c0_2 = arith.constant 0 : index
    %1 = vector.load %arg3[%c0_1, %c0_2] : memref<1x32xf32, #tpu.memory_space<vmem>>, vector<1x32xf32>
    %c0_3 = arith.constant 0 : index
    %c0_4 = arith.constant 0 : index
    %2 = vector.load %arg5[%c0_3, %c0_4] : memref<1x32xf32, #tpu.memory_space<vmem>>, vector<1x32xf32>
    %c0_5 = arith.constant 0 : index
    %c0_6 = arith.constant 0 : index
    %3 = vector.load %arg1[%c0_5, %c0_6] : memref<8x32xf32, #tpu.memory_space<vmem>>, vector<8x32xf32>
    %cst = arith.constant dense<0.000000e+00> : vector<8xf32>
    %4 = vector.multi_reduction <add>, %3, %cst [1] : vector<8x32xf32> to vector<8xf32>
    %5 = vector.shape_cast %4 : vector<8xf32> to vector<8x1xf32>
    %cst_7 = arith.constant 3.200000e+01 : f32
    %6 = vector.broadcast %cst_7 : f32 to vector<8x1xf32>
    %7 = arith.divf %5, %6 : vector<8x1xf32>
    %8 = vector.broadcast %7 : vector<8x1xf32> to vector<8x32xf32>
    %9 = arith.subf %3, %8 : vector<8x32xf32>
    %10 = arith.mulf %9, %9 : vector<8x32xf32>
    %cst_8 = arith.constant dense<0.000000e+00> : vector<8xf32>
    %11 = vector.multi_reduction <add>, %10, %cst_8 [1] : vector<8x32xf32> to vector<8xf32>
    %12 = vector.shape_cast %11 : vector<8xf32> to vector<8x1xf32>
    %cst_9 = arith.constant 3.200000e+01 : f32
    %13 = vector.broadcast %cst_9 : f32 to vector<8x1xf32>
    %14 = arith.divf %12, %13 : vector<8x1xf32>
    %cst_10 = arith.constant 9.99999974E-6 : f32
    %15 = vector.broadcast %cst_10 : f32 to vector<8x1xf32>
    %16 = arith.addf %14, %15 : vector<8x1xf32>
    %17 = math.rsqrt %16 : vector<8x1xf32>
    %18 = vector.broadcast %17 : vector<8x1xf32> to vector<8x32xf32>
    %19 = arith.mulf %9, %18 : vector<8x32xf32>
    %20 = vector.broadcast %0 : vector<1x32xf32> to vector<8x32xf32>
    %21 = arith.mulf %19, %20 : vector<8x32xf32>
    %22 = vector.broadcast %1 : vector<1x32xf32> to vector<8x32xf32>
    %23 = arith.addf %21, %22 : vector<8x32xf32>
    %c0_11 = arith.constant 0 : index
    %c0_12 = arith.constant 0 : index
    %24 = vector.load %arg4[%c0_11, %c0_12] : memref<32x32xf32, #tpu.memory_space<vmem>>, vector<32x32xf32>
    %cst_13 = arith.constant dense<0.000000e+00> : vector<8x32xf32>
    %25 = tpu.matmul %23, %24, %cst_13 {dimension_numbers = #tpu.dot_dimension_numbers<[1], [1], [0], [0], [0, 0, 1, 0], [], []>} : vector<8x32xf32>, vector<32x32xf32>, vector<8x32xf32> -> vector<8x32xf32>
    %26 = vector.broadcast %2 : vector<1x32xf32> to vector<8x32xf32>
    %27 = arith.addf %25, %26 : vector<8x32xf32>
    %cst_14 = arith.constant 0.000000e+00 : f32
    %28 = vector.broadcast %cst_14 : f32 to vector<8x32xf32>
    %29 = arith.maximumf %27, %28 : vector<8x32xf32>
    %c0_15 = arith.constant 0 : index
    %c0_16 = arith.constant 0 : index
    %30 = vector.load %arg6[%c0_15, %c0_16] : memref<8x32xf32, #tpu.memory_space<vmem>>, vector<8x32xf32>
    tpu.vector_store %arg6[%c0_15, %c0_16], %29 {strides = array<i32>} : memref<8x32xf32, #tpu.memory_space<vmem>>, vector<8x32xf32>,
    return
  }
  func.func @transform_0(%arg0: i32) -> (i32, i32) {
    %c0_i32 = arith.constant 0 : i32
    %c0_i32_0 = arith.constant 0 : i32
    return %arg0, %c0_i32 : i32, i32
  }
  func.func @transform_1(%arg0: i32) -> (i32, i32) {
    %c0_i32 = arith.constant 0 : i32
    %c0_i32_0 = arith.constant 0 : i32
    %c0_i32_1 = arith.constant 0 : i32
    return %c0_i32, %c0_i32_0 : i32, i32
  }
  func.func @transform_2(%arg0: i32) -> (i32, i32) {
    %c0_i32 = arith.constant 0 : i32
    %c0_i32_0 = arith.constant 0 : i32
    %c0_i32_1 = arith.constant 0 : i32
    return %c0_i32, %c0_i32_0 : i32, i32
  }
  func.func @transform_3(%arg0: i32) -> (i32, i32) {
    %c0_i32 = arith.constant 0 : i32
    %c0_i32_0 = arith.constant 0 : i32
    %c0_i32_1 = arith.constant 0 : i32
    return %c0_i32, %c0_i32_0 : i32, i32
  }
  func.func @transform_4(%arg0: i32) -> (i32, i32) {
    %c0_i32 = arith.constant 0 : i32
    %c0_i32_0 = arith.constant 0 : i32
    %c0_i32_1 = arith.constant 0 : i32
    return %c0_i32, %c0_i32_0 : i32, i32
  }
  func.func @transform_5(%arg0: i32) -> (i32, i32) {
    %c0_i32 = arith.constant 0 : i32
    %c0_i32_0 = arith.constant 0 : i32
    return %arg0, %c0_i32 : i32, i32
  }
}

</mosaic_0001>

<llo_original>
// kernel: tpu_custom_call.1
$region0: #{tpu_custom_call.1}
  #allocation0 [shape = 'u32[]', space=smem, size = 0x4, offset = 0x4, fixed_abs, tag = 'smem constant byte address 0x4 - core index']
  #allocation1 [shape = 'u32[144,128]{1,0:T(1,128)}', space=vmem, size = 0x12000, scoped, tag = 'internal scratch']
  %s0 = inlined_call_operand.hbm [shape: f32[8,32], index: 0, kind: input, shape index: {}]
  %s1 = inlined_call_operand.vmem [shape: f32[1,32], index: 1, kind: input, shape index: {}]
  %s2 = inlined_call_operand.vmem [shape: f32[1,32], index: 2, kind: input, shape index: {}]
  %s3 = inlined_call_operand.hbm [shape: f32[32,32], index: 3, kind: input, shape index: {}]
  %s4 = inlined_call_operand.vmem [shape: f32[1,32], index: 4, kind: input, shape index: {}]
  %s5 = inlined_call_operand.hbm [shape: f32[8,32], index: 5, kind: output, shape index: {}]
  %s6 = sld [smem:[#allocation0]]
  $region38: #{tpu_custom_call.1} parent=0
    _
  %s8 = ssub.s32 1, %s6
  %s9 = scalar_select 0, %s8, %s6
  $region1: #{tpu_custom_call.1} parent=0
    #allocation2 [shape = 'u8[4096]{0}', space=vmem, size = 0x1000, scoped, tag = 'input window, operand 0, single buffered']
    #allocation3 [shape = 's32[1]{0}', space=sflag, size = 0x4, scoped, tag = 'scoped memory for tpu_custom_call.1']
    #allocation4 [shape = 's32[1]{0}', space=sflag, size = 0x4, scoped, tag = 'scoped memory for tpu_custom_call.1']
    #allocation5 [shape = 'u8[16384]{0}', space=vmem, size = 0x4000, scoped, tag = 'input window, operand 3, single buffered']
    #allocation6 [shape = 's32[1]{0}', space=sflag, size = 0x4, scoped, tag = 'scoped memory for tpu_custom_call.1']
    #allocation7 [shape = 'u8[4096]{0}', space=vmem, size = 0x1000, scoped, tag = 'output window, operand 0, single buffered']
    %10 = vsyncpa [#allocation3], 0
    %11 = vsyncpa [#allocation6], 0
    %12 = vsyncpa [#allocation4], 0
    // Predicated region
    $region2: #{tpu_custom_call.1} parent=1 // pred_check
      _
    $region3: #{tpu_custom_call.1} parent=1 // pred_check_branch
      %14 = sbr.rel (0) target = $region5
    $region4: #{tpu_custom_call.1} parent=1 // pred_region
      %s16 = ssub.s32 128, 128
      %17 = vsyncadd [#allocation3], %s16
      %s19 = sshll.u32 [#allocation2], 4
      %s20 = int_to_ptr.vmem [resolvable:$true] %s19
      %22 = dma.hbm_to_vmem [thread:$0]  %s0, 128, %s20, [#allocation3]
    $region5: #{tpu_custom_call.1} parent=1 // pred_fallthru
      _
    // Predicated region
    $region6: #{tpu_custom_call.1} parent=1 // pred_check
      _
    $region7: #{tpu_custom_call.1} parent=1 // pred_check_branch
      %24 = sbr.rel (0) target = $region9
    $region8: #{tpu_custom_call.1} parent=1 // pred_region
      _
    $region9: #{tpu_custom_call.1} parent=1 // pred_fallthru
      _
    // Predicated region
    $region10: #{tpu_custom_call.1} parent=1 // pred_check
      _
    $region11: #{tpu_custom_call.1} parent=1 // pred_check_branch
      %26 = sbr.rel (0) target = $region13
    $region12: #{tpu_custom_call.1} parent=1 // pred_region
      _
    $region13: #{tpu_custom_call.1} parent=1 // pred_fallthru
      _
    // Predicated region
    $region14: #{tpu_custom_call.1} parent=1 // pred_check
      _
    $region15: #{tpu_custom_call.1} parent=1 // pred_check_branch
      %28 = sbr.rel (0) target = $region17
    $region16: #{tpu_custom_call.1} parent=1 // pred_region
      %s30 = ssub.s32 512, 512
      %31 = vsyncadd [#allocation6], %s30
      %s32 = sshll.u32 [#allocation5], 4
      %s33 = int_to_ptr.vmem [resolvable:$true] %s32
      %38 = dma.hbm_to_vmem [thread:$0]  %s3, 512, %s33, [#allocation6], 128, 128, 8
    $region17: #{tpu_custom_call.1} parent=1 // pred_fallthru
      _
    // Predicated region
    $region18: #{tpu_custom_call.1} parent=1 // pred_check
      _
    $region19: #{tpu_custom_call.1} parent=1 // pred_check_branch
      %40 = sbr.rel (0) target = $region21
    $region20: #{tpu_custom_call.1} parent=1 // pred_region
      _
    $region21: #{tpu_custom_call.1} parent=1 // pred_fallthru
      _
    // Predicated region
    $region22: #{tpu_custom_call.1} parent=1 // pred_check
      _
    $region23: #{tpu_custom_call.1} parent=1 // pred_check_branch
      %42 = sbr.rel (0) target = $region25
    $region24: #{tpu_custom_call.1} parent=1 // pred_region
      %43 = dma.done [#allocation3], 128
    $region25: #{tpu_custom_call.1} parent=1 // pred_fallthru
      _
    // Predicated region
    $region26: #{tpu_custom_call.1} parent=1 // pred_check
      _
    $region27: #{tpu_custom_call.1} parent=1 // pred_check_branch
      %45 = sbr.rel (0) target = $region29
    $region28: #{tpu_custom_call.1} parent=1 // pred_region
      %46 = dma.done [#allocation6], 512
    $region29: #{tpu_custom_call.1} parent=1 // pred_fallthru
      _
    %v47 = vld [vmem:[%s1] sm:$0x1]
    %v48 = vld [vmem:[%s2] sm:$0x1]
    %v49 = vld [vmem:[%s4] sm:$0x1]
    %v50 = vld [vmem:[#allocation2] sm:$0xff]
    %vm51 = vcmask 261120
    %v52 = vsel %vm51, %v50, 0.0
    %53 = vadd.xlane.f32.xlu0 %v52
    %v54 = vpop.xlane.xlu0 %53
    %v55 = vrcp.pop 32.0
    %v56 = vmul.f32 %v54, %v55
    %v57 = vsub.f32 %v50, %v56
    %v58 = vmul.f32 %v57, %v57
    %v59 = vsel %vm51, %v58, 0.0
    %60 = vadd.xlane.f32.xlu0 %v59
    %v61 = vpop.xlane.xlu0 %60
    %v62 = vmul.f32 %v61, %v55
    %v63 = vadd.f32 %v62, 1e-05
    %v64 = vrsqrt.pop %v63
    %v65 = vmul.f32 %v57, %v64
    %v67 = vlaneseq
    %v68 = vshrl.u32 %v67, 7
    %v69 = vsub.s32 0, %v68
    %v70 = vrot.slane %v47, %v69
    %v72 = vmul.f32 %v65, %v70
    %v74 = vlaneseq
    %v75 = vshrl.u32 %v74, 7
    %v76 = vsub.s32 0, %v75
    %v77 = vrot.slane %v48, %v76
    %v79 = vadd.f32 %v72, %v77
    %v80 = vld [vmem:[#allocation5] sm:$0xff]
    %v81 = vld [vmem:[#allocation5 + $0x8] sm:$0xff]
    %v82 = vld [vmem:[#allocation5 + $0x10] sm:$0xff]
    %v83 = vld [vmem:[#allocation5 + $0x18] sm:$0xff]
    %v85 = vlaneseq
    %v86 = vshrl.u32 %v85, 7
    %v87 = vsub.s32 0, %v86
    %v88 = vrot.slane %v49, %v87
    %v91 = vsel %vm51, %v79, 0
    %v94 = vsel %vm51, %v80, 0
    %v97 = vsel %vm51, %v81, 0
    %v100 = vsel %vm51, %v82, 0
    %v103 = vsel %vm51, %v83, 0
    %105 = vmatprep.subr.mxu0 0.0
    %106 = vmatpush1.xpose.msra.mxu0 %v94
    %107 = vmatprep.subr.mxu0 0.0
    %108 = vmatpush1.xpose.msra.mxu0 %v97
    %109 = vmatprep.subr.mxu0 0.0
    %110 = vmatpush1.xpose.msra.mxu0 %v100
    %111 = vmatprep.subr.mxu0 0.0
    %112 = vmatpush1.xpose.msra.mxu0 %v103
    %113 = vmatprep.subr.mxu0 0.0
    %114 = vmatpush1.xpose.msra.mxu0 0.0
    %115 = vmatprep.subr.mxu0 0.0
    %116 = vmatpush1.xpose.msra.mxu0 0.0
    %117 = vmatprep.subr.mxu0 0.0
    %118 = vmatpush1.xpose.msra.mxu0 0.0
    %119 = vmatprep.subr.mxu0 0.0
    %120 = vmatpush1.xpose.msra.mxu0 0.0
    %121 = vmatprep.subr.mxu0 0.0
    %122 = vmatpush1.xpose.msra.mxu0 0.0
    %123 = vmatprep.subr.mxu0 0.0
    %124 = vmatpush1.xpose.msra.mxu0 0.0
    %125 = vmatprep.subr.mxu0 0.0
    %126 = vmatpush1.xpose.msra.mxu0 0.0
    %127 = vmatprep.subr.mxu0 0.0
    %128 = vmatpush1.xpose.msra.mxu0 0.0
    %129 = vmatprep.subr.mxu0 0.0
    %130 = vmatpush1.xpose.msra.mxu0 0.0
    %131 = vmatprep.subr.mxu0 0.0
    %132 = vmatpush1.xpose.msra.mxu0 0.0
    %133 = vmatprep.subr.mxu0 0.0
    %134 = vmatpush1.xpose.msra.mxu0 0.0
    %135 = vmatprep.subr.mxu0 0.0
    %136 = vmatpush1.xpose.msra.mxu0 0.0
    %137 = vmatprep.subr.mxu0 0.0
    %138 = vmatpush1.xpose.msra.mxu0 0.0
    %139 = vmatprep.subr.mxu0 0.0
    %140 = vmatpush1.xpose.msra.mxu0 0.0
    %141 = vmatprep.subr.mxu0 0.0
    %142 = vmatpush1.xpose.msra.mxu0 0.0
    %143 = vmatprep.subr.mxu0 0.0
    %144 = vmatpush1.xpose.msra.mxu0 0.0
    %145 = vmatprep.subr.mxu0 0.0
    %146 = vmatpush1.xpose.msra.mxu0 0.0
    %147 = vmatprep.subr.mxu0 0.0
    %148 = vmatpush1.xpose.msra.mxu0 0.0
    %149 = vmatprep.subr.mxu0 0.0
    %150 = vmatpush1.xpose.msra.mxu0 0.0
    %151 = vmatprep.subr.mxu0 0.0
    %152 = vmatpush1.xpose.msra.mxu0 0.0
    %153 = vmatprep.subr.mxu0 0.0
    %154 = vmatpush1.xpose.msra.mxu0 0.0
    %155 = vmatprep.subr.mxu0 0.0
    %156 = vmatpush1.xpose.msra.mxu0 0.0
    %157 = vmatprep.subr.mxu0 0.0
    %158 = vmatpush1.xpose.msra.mxu0 0.0
    %159 = vmatprep.subr.mxu0 0.0
    %160 = vmatpush1.xpose.msra.mxu0 0.0
    %161 = vmatprep.subr.mxu0 0.0
    %162 = vmatpush1.xpose.msra.mxu0 0.0
    %163 = vmatprep.subr.mxu0 0.0
    %164 = vmatpush1.xpose.msra.mxu0 0.0
    %165 = vmatprep.subr.mxu0 0.0
    %166 = vmatpush1.xpose.msra.mxu0 0.0
    %167 = vmatprep.subr.mxu0 0.0
    %168 = vmatpush1.xpose.msra.mxu0 0.0
    %169 = vmatprep.mubr.f32.mxu0 0.0
    %170 = vmatmul.mubr.f32.gmra.mrb[0].mxu0 %v91
    %v171 = vpop.f32.mrb[0].mxu0
    %v172 = vadd.f32 %v88, %v171
    %v173 = vpop.f32.mrb[0].mxu0
    %174 = vdwg.mxu0
    %v175 = vmax.f32 %v172, 0.0
    %176 = vst.msk [vmem:[#allocation7] sm:$0xff] %vm51, %v175
    // Predicated region
    $region30: #{tpu_custom_call.1} parent=1 // pred_check
      _
    $region31: #{tpu_custom_call.1} parent=1 // pred_check_branch
      %178 = sbr.rel (0) target = $region33
    $region32: #{tpu_custom_call.1} parent=1 // pred_region
      %s180 = ssub.s32 128, 128
      %181 = vsyncadd [#allocation4], %s180
      %s183 = sshll.u32 [#allocation7], 4
      %s184 = int_to_ptr.vmem [resolvable:$true] %s183
      %186 = dma.vmem_to_hbm [thread:$0]  %s184, 128, %s5, [#allocation4]
    $region33: #{tpu_custom_call.1} parent=1 // pred_fallthru
      _
    // Predicated region
    $region34: #{tpu_custom_call.1} parent=1 // pred_check
      _
    $region35: #{tpu_custom_call.1} parent=1 // pred_check_branch
      %188 = sbr.rel (0) target = $region37
    $region36: #{tpu_custom_call.1} parent=1 // pred_region
      %189 = dma.done [#allocation4], 128
    $region37: #{tpu_custom_call.1} parent=1 // pred_fallthru
      _
    %190 = vsyncpa [#allocation3], 1
    %191 = vsyncpa [#allocation6], 1
    %192 = vsyncpa [#allocation4], 1

</llo_original>
